<compile_context>
chip_gen: v5e
topology: v5e:2x2
jax: 0.10.0
libtpu: 0.0.40
codegen_flags: <defaults>
</compile_context>

<pallas_src>
import functools

import jax
import jax.numpy as jnp
from jax.experimental import pallas as pl
from jax.experimental.pallas import tpu as pltpu


def se_kernel(x_ref, w1_ref, b1_ref, w2_ref, b2_ref, o_ref, *, hw_inv):
    # x_ref/o_ref: (TB, C, HW)  w1: (C, Cr)  b1: (1, Cr)  w2: (Cr, C)  b2: (1, C)
    x = x_ref[...]

    # Squeeze: global average pool over the spatial (lane) axis, accumulated
    # in f32 regardless of the activation dtype.  Dividing by the true H*W.
    pooled = jnp.sum(x.astype(jnp.float32), axis=-1) * hw_inv          # (TB, C)

    # Excite: Linear -> ReLU -> Linear -> Sigmoid, all in f32.  With batched
    # blocks the matmuls have M=TB so MXU push/drain latency is amortized;
    # they are noise next to the HBM stream of x either way.
    h = jnp.dot(pooled, w1_ref[...], preferred_element_type=jnp.float32)
    h = jnp.maximum(h + b1_ref[...], 0.0)                              # (TB, Cr)
    s = jnp.dot(h, w2_ref[...], preferred_element_type=jnp.float32)
    s = jax.nn.sigmoid(s + b2_ref[...])                                # (TB, C)

    # Scale: broadcast the per-(sample, channel) gate along the spatial axis.
    o_ref[...] = (x.astype(jnp.float32) * s[:, :, None]).astype(o_ref.dtype)


def se_module(x, w1, b1, w2, b2):
    """SEModule forward.

    x : (B, C, H, W) activations (float32 or bfloat16)
    w1: (C, Cr)  = fc1.weight.T     b1: (Cr,) = fc1.bias
    w2: (Cr, C)  = fc2.weight.T     b2: (C,)  = fc2.bias
    """
    B, C, H, W = x.shape
    Cr = w1.shape[1]
    hw = H * W
    itemsize = jnp.dtype(x.dtype).itemsize

    x3 = x.reshape(B, C, hw)                      # contiguous collapse: no copy
    w1f = w1.astype(jnp.float32)
    w2f = w2.astype(jnp.float32)
    b1r = b1.reshape(1, Cr).astype(jnp.float32)
    b2r = b2.reshape(1, C).astype(jnp.float32)

    # --- choose the batch block (TB) and the scoped-VMEM limit ---------------
    per_sample = C * hw * itemsize
    weight_bytes = 2 * (C * Cr + Cr + Cr * C + C) * 4   # 2 pipeline buffers each
    try:
        vmem_cap = pltpu.get_tpu_info().vmem_capacity_bytes
    except Exception:
        vmem_cap = 64 << 20                              # conservative: v7x per-TC VMEM
    vmem_budget = int(vmem_cap) * 3 // 4                 # ~75% of physical

    tb = max(1, int((2 << 20) // max(per_sample, 1)))    # target ~2 MiB input blocks
    if B >= 8:
        tb = min(tb, max(1, B // 8))                     # keep >= 8 grid steps (v7x: 2 TCs)
    tb = max(1, min(tb, B))
    while tb > 1 and 4 * tb * per_sample + weight_bytes > vmem_budget:
        tb -= 1                                          # in+out, double-buffered
    while B % tb:
        tb -= 1                                          # avoid ragged last block

    needed = 4 * tb * per_sample + weight_bytes
    vmem_limit = None
    if needed > (16 << 20):                              # v5e's default scoped budget
        vmem_limit = min(needed + (2 << 20), vmem_budget)
    # TODO(synk): if a single-sample slab (4*C*HW*itemsize) exceeds the budget,
    # the spatial axis would need its own grid axis plus a pool accumulator.

    kernel = functools.partial(se_kernel, hw_inv=1.0 / hw)

    out3 = pl.pallas_call(
        kernel,
        out_shape=jax.ShapeDtypeStruct((B, C, hw), x.dtype),
        grid=(B // tb,),
        in_specs=[
            pl.BlockSpec((tb, C, hw), lambda b: (b, 0, 0)),
            # Weight/bias blocks are grid-constant; the pipeline DMAs them once.
            pl.BlockSpec((C, Cr), lambda b: (0, 0)),
            pl.BlockSpec((1, Cr), lambda b: (0, 0)),
            pl.BlockSpec((Cr, C), lambda b: (0, 0)),
            pl.BlockSpec((1, C), lambda b: (0, 0)),
        ],
        out_specs=pl.BlockSpec((tb, C, hw), lambda b: (b, 0, 0)),
        compiler_params=pltpu.CompilerParams(
            dimension_semantics=("parallel",),
            vmem_limit_bytes=vmem_limit,
        ),
        cost_estimate=pl.CostEstimate(
            flops=4 * B * C * Cr + 2 * B * C * hw,
            transcendentals=B * C,
            bytes_accessed=2 * B * C * hw * itemsize + (C * Cr + Cr + Cr * C + C) * 4,
        ),
    )(x3, w1f, b1r, w2f, b2r)

    return out3.reshape(B, C, H, W)


def se_reference(x, w1, b1, w2, b2):
    pooled = jnp.mean(x.astype(jnp.float32), axis=(2, 3))   # (B, C)
    h = jnp.maximum(pooled @ w1 + b1, 0.0)                  # (B, Cr)
    s = jax.nn.sigmoid(h @ w2 + b2)                         # (B, C)
    return x.astype(jnp.float32) * s[:, :, None, None]


if __name__ == "__main__":
    # Module config: in_channels=16, reduction=8 -> hidden channels = 2.
    B, C, H, W = 2, 16, 16, 16
    reduction = 8
    Cr = C // reduction

    key = jax.random.PRNGKey(0)
    kx, k1, kb1, k2, kb2 = jax.random.split(key, 5)

    x = jax.random.normal(kx, (B, C, H, W), dtype=jnp.float32)
    # nn.Linear(in_channels, channels): weight (Cr, C) stored transposed (C, Cr).
    w1 = jax.random.normal(k1, (C, Cr), dtype=jnp.float32) * 0.1
    b1 = jax.random.normal(kb1, (Cr,), dtype=jnp.float32) * 0.1
    # nn.Linear(channels, in_channels): weight (C, Cr) stored transposed (Cr, C).
    w2 = jax.random.normal(k2, (Cr, C), dtype=jnp.float32) * 0.1
    b2 = jax.random.normal(kb2, (C,), dtype=jnp.float32) * 0.1

    out = jax.block_until_ready(se_module(x, w1, b1, w2, b2))
    ref = se_reference(x, w1, b1, w2, b2)
    assert out.shape == (B, C, H, W)
    assert jnp.allclose(out, ref, atol=1e-5, rtol=1e-5), "mismatch vs reference"

    # Non-128-aligned spatial size (7x7, like late ResNet SE): exercises the
    # full-dim-block path (no wrapper pad/slice copies anymore).
    x2 = jax.random.normal(jax.random.PRNGKey(1), (B, C, 7, 7), dtype=jnp.float32)
    out2 = jax.block_until_ready(se_module(x2, w1, b1, w2, b2))
    ref2 = se_reference(x2, w1, b1, w2, b2)
    assert jnp.allclose(out2, ref2, atol=1e-5, rtol=1e-5), "mismatch (7x7 path)"

    # bf16 I/O path (halves HBM traffic; compute stays f32).
    xb = x.astype(jnp.bfloat16)
    out3 = jax.block_until_ready(se_module(xb, w1, b1, w2, b2))
    ref3 = se_reference(xb.astype(jnp.float32), w1, b1, w2, b2)
    assert out3.dtype == jnp.bfloat16
    assert jnp.allclose(out3.astype(jnp.float32), ref3, atol=2e-2, rtol=2e-2), \
        "mismatch (bf16 path)"

    print("KERNEL_OK")
</pallas_src>

<mosaic_0001>
module attributes {stable_mosaic.version = 11 : i64} {
  func.func @se_kernel(%arg0: i32, %arg1: memref<2x16x256xf32, #tpu.memory_space<vmem>>, %arg2: memref<16x2xf32, #tpu.memory_space<vmem>>, %arg3: memref<1x2xf32, #tpu.memory_space<vmem>>, %arg4: memref<2x16xf32, #tpu.memory_space<vmem>>, %arg5: memref<1x16xf32, #tpu.memory_space<vmem>>, %arg6: memref<2x16x256xf32, #tpu.memory_space<vmem>>) attributes {dimension_semantics = [#tpu.dimension_semantics<parallel>], iteration_bounds = array<i64: 1>, scalar_prefetch = 0 : i64, scratch_operands = 0 : i64, tpu.core_type = #tpu.core_type<tc>, window_params = [{transform_indices = @transform_0, window_bounds = array<i64: 2, 16, 256>}, {pipeline_mode = #tpu.pipeline_mode<synchronous>, transform_indices = @transform_1, window_bounds = array<i64: 16, 2>}, {pipeline_mode = #tpu.pipeline_mode<synchronous>, transform_indices = @transform_2, window_bounds = array<i64: 1, 2>}, {pipeline_mode = #tpu.pipeline_mode<synchronous>, transform_indices = @transform_3, window_bounds = array<i64: 2, 16>}, {pipeline_mode = #tpu.pipeline_mode<synchronous>, transform_indices = @transform_4, window_bounds = array<i64: 1, 16>}, {transform_indices = @transform_5, window_bounds = array<i64: 2, 16, 256>}]} {
    %c0 = arith.constant 0 : index
    %c0_0 = arith.constant 0 : index
    %c0_1 = arith.constant 0 : index
    %0 = vector.load %arg1[%c0, %c0_0, %c0_1] : memref<2x16x256xf32, #tpu.memory_space<vmem>>, vector<2x16x256xf32>
    %cst = arith.constant dense<0.000000e+00> : vector<2x16xf32>
    %1 = vector.multi_reduction <add>, %0, %cst [2] : vector<2x16x256xf32> to vector<2x16xf32>
    %cst_2 = arith.constant 3.906250e-03 : f32
    %2 = vector.broadcast %cst_2 : f32 to vector<2x16xf32>
    %3 = arith.mulf %1, %2 : vector<2x16xf32>
    %c0_3 = arith.constant 0 : index
    %c0_4 = arith.constant 0 : index
    %4 = vector.load %arg2[%c0_3, %c0_4] : memref<16x2xf32, #tpu.memory_space<vmem>>, vector<16x2xf32>
    %cst_5 = arith.constant dense<0.000000e+00> : vector<2x2xf32>
    %5 = tpu.matmul %3, %4, %cst_5 {dimension_numbers = #tpu.dot_dimension_numbers<[1], [0], [0], [1], [0, 0, 1, 1], [], []>} : vector<2x16xf32>, vector<16x2xf32>, vector<2x2xf32> -> vector<2x2xf32>
    %c0_6 = arith.constant 0 : index
    %c0_7 = arith.constant 0 : index
    %6 = vector.load %arg3[%c0_6, %c0_7] : memref<1x2xf32, #tpu.memory_space<vmem>>, vector<1x2xf32>
    %7 = vector.broadcast %6 : vector<1x2xf32> to vector<2x2xf32>
    %8 = arith.addf %5, %7 : vector<2x2xf32>
    %cst_8 = arith.constant 0.000000e+00 : f32
    %9 = vector.broadcast %cst_8 : f32 to vector<2x2xf32>
    %10 = arith.maximumf %8, %9 : vector<2x2xf32>
    %c0_9 = arith.constant 0 : index
    %c0_10 = arith.constant 0 : index
    %11 = vector.load %arg4[%c0_9, %c0_10] : memref<2x16xf32, #tpu.memory_space<vmem>>, vector<2x16xf32>
    %cst_11 = arith.constant dense<0.000000e+00> : vector<2x16xf32>
    %12 = tpu.matmul %10, %11, %cst_11 {dimension_numbers = #tpu.dot_dimension_numbers<[1], [0], [0], [1], [0, 0, 1, 1], [], []>} : vector<2x2xf32>, vector<2x16xf32>, vector<2x16xf32> -> vector<2x16xf32>
    %c0_12 = arith.constant 0 : index
    %c0_13 = arith.constant 0 : index
    %13 = vector.load %arg5[%c0_12, %c0_13] : memref<1x16xf32, #tpu.memory_space<vmem>>, vector<1x16xf32>
    %14 = vector.broadcast %13 : vector<1x16xf32> to vector<2x16xf32>
    %15 = arith.addf %12, %14 : vector<2x16xf32>
    %16 = arith.negf %15 : vector<2x16xf32>
    %17 = math.exp %16 : vector<2x16xf32>
    %cst_14 = arith.constant 1.000000e+00 : f32
    %18 = vector.broadcast %cst_14 : f32 to vector<2x16xf32>
    %19 = arith.addf %18, %17 : vector<2x16xf32>
    %20 = arith.divf %18, %19 : vector<2x16xf32>
    %21 = vector.shape_cast %20 : vector<2x16xf32> to vector<2x16x1xf32>
    %22 = vector.broadcast %21 : vector<2x16x1xf32> to vector<2x16x256xf32>
    %23 = arith.mulf %0, %22 : vector<2x16x256xf32>
    %c0_15 = arith.constant 0 : index
    %c0_16 = arith.constant 0 : index
    %c0_17 = arith.constant 0 : index
    %24 = vector.load %arg6[%c0_15, %c0_16, %c0_17] : memref<2x16x256xf32, #tpu.memory_space<vmem>>, vector<2x16x256xf32>
    tpu.vector_store %arg6[%c0_15, %c0_16, %c0_17], %23 {strides = array<i32>} : memref<2x16x256xf32, #tpu.memory_space<vmem>>, vector<2x16x256xf32>,
    return
  }
  func.func @transform_0(%arg0: i32) -> (i32, i32, i32) {
    %c0_i32 = arith.constant 0 : i32
    %c0_i32_0 = arith.constant 0 : i32
    %c0_i32_1 = arith.constant 0 : i32
    return %arg0, %c0_i32, %c0_i32_0 : i32, i32, i32
  }
  func.func @transform_1(%arg0: i32) -> (i32, i32) {
    %c0_i32 = arith.constant 0 : i32
    %c0_i32_0 = arith.constant 0 : i32
    %c0_i32_1 = arith.constant 0 : i32
    return %c0_i32, %c0_i32_0 : i32, i32
  }
  func.func @transform_2(%arg0: i32) -> (i32, i32) {
    %c0_i32 = arith.constant 0 : i32
    %c0_i32_0 = arith.constant 0 : i32
    %c0_i32_1 = arith.constant 0 : i32
    return %c0_i32, %c0_i32_0 : i32, i32
  }
  func.func @transform_3(%arg0: i32) -> (i32, i32) {
    %c0_i32 = arith.constant 0 : i32
    %c0_i32_0 = arith.constant 0 : i32
    %c0_i32_1 = arith.constant 0 : i32
    return %c0_i32, %c0_i32_0 : i32, i32
  }
  func.func @transform_4(%arg0: i32) -> (i32, i32) {
    %c0_i32 = arith.constant 0 : i32
    %c0_i32_0 = arith.constant 0 : i32
    %c0_i32_1 = arith.constant 0 : i32
    return %c0_i32, %c0_i32_0 : i32, i32
  }
  func.func @transform_5(%arg0: i32) -> (i32, i32, i32) {
    %c0_i32 = arith.constant 0 : i32
    %c0_i32_0 = arith.constant 0 : i32
    %c0_i32_1 = arith.constant 0 : i32
    return %arg0, %c0_i32, %c0_i32_0 : i32, i32, i32
  }
}

</mosaic_0001>

<llo_original>
// kernel: tpu_custom_call.1
$region0: #{tpu_custom_call.1}
  #allocation0 [shape = 'u32[]', space=smem, size = 0x4, offset = 0x4, fixed_abs, tag = 'smem constant byte address 0x4 - core index']
  #allocation1 [shape = 'u32[72,128]{1,0:T(1,128)}', space=vmem, size = 0x9000, scoped, tag = 'internal scratch']
  %s0 = inlined_call_operand.hbm [shape: f32[2,16,256], index: 0, kind: input, shape index: {}]
  %s1 = inlined_call_operand.vmem [shape: f32[16,2], index: 1, kind: input, shape index: {}]
  %s2 = inlined_call_operand.vmem [shape: f32[1,2], index: 2, kind: input, shape index: {}]
  %s3 = inlined_call_operand.vmem [shape: f32[2,16], index: 3, kind: input, shape index: {}]
  %s4 = inlined_call_operand.vmem [shape: f32[1,16], index: 4, kind: input, shape index: {}]
  %s5 = inlined_call_operand.hbm [shape: f32[2,16,256], index: 5, kind: output, shape index: {}]
  %s6 = sld [smem:[#allocation0]]
  $region34: #{tpu_custom_call.1} parent=0
    _
  %s8 = ssub.s32 1, %s6
  %s9 = scalar_select 0, %s8, %s6
  $region1: #{tpu_custom_call.1} parent=0
    #allocation2 [shape = 'u8[32768]{0}', space=vmem, size = 0x8000, scoped, tag = 'input window, operand 0, single buffered']
    #allocation3 [shape = 's32[1]{0}', space=sflag, size = 0x4, scoped, tag = 'scoped memory for tpu_custom_call.1']
    #allocation4 [shape = 's32[1]{0}', space=sflag, size = 0x4, scoped, tag = 'scoped memory for tpu_custom_call.1']
    #allocation5 [shape = 'u8[32768]{0}', space=vmem, size = 0x8000, scoped, tag = 'output window, operand 0, single buffered']
    %10 = vsyncpa [#allocation3], 0
    %11 = vsyncpa [#allocation4], 0
    // Predicated region
    $region2: #{tpu_custom_call.1} parent=1 // pred_check
      _
    $region3: #{tpu_custom_call.1} parent=1 // pred_check_branch
      %13 = sbr.rel (0) target = $region5
    $region4: #{tpu_custom_call.1} parent=1 // pred_region
      %15 = vsyncadd [#allocation3], 0
      %s16 = sshll.u32 %s0, 4
      %s17 = int_to_ptr.hbm [resolvable:$true] %s16
      %s18 = sshll.u32 [#allocation2], 4
      %s19 = int_to_ptr.vmem [resolvable:$true] %s18
      %24 = dma.hbm_to_vmem [thread:$0]  %s17, 1024, %s19, [#allocation3], 256, 256, 16
    $region5: #{tpu_custom_call.1} parent=1 // pred_fallthru
      _
    // Predicated region
    $region6: #{tpu_custom_call.1} parent=1 // pred_check
      _
    $region7: #{tpu_custom_call.1} parent=1 // pred_check_branch
      %26 = sbr.rel (0) target = $region9
    $region8: #{tpu_custom_call.1} parent=1 // pred_region
      _
    $region9: #{tpu_custom_call.1} parent=1 // pred_fallthru
      _
    // Predicated region
    $region10: #{tpu_custom_call.1} parent=1 // pred_check
      _
    $region11: #{tpu_custom_call.1} parent=1 // pred_check_branch
      %28 = sbr.rel (0) target = $region13
    $region12: #{tpu_custom_call.1} parent=1 // pred_region
      _
    $region13: #{tpu_custom_call.1} parent=1 // pred_fallthru
      _
    // Predicated region
    $region14: #{tpu_custom_call.1} parent=1 // pred_check
      _
    $region15: #{tpu_custom_call.1} parent=1 // pred_check_branch
      %30 = sbr.rel (0) target = $region17
    $region16: #{tpu_custom_call.1} parent=1 // pred_region
      _
    $region17: #{tpu_custom_call.1} parent=1 // pred_fallthru
      _
    // Predicated region
    $region18: #{tpu_custom_call.1} parent=1 // pred_check
      _
    $region19: #{tpu_custom_call.1} parent=1 // pred_check_branch
      %32 = sbr.rel (0) target = $region21
    $region20: #{tpu_custom_call.1} parent=1 // pred_region
      _
    $region21: #{tpu_custom_call.1} parent=1 // pred_fallthru
      _
    // Predicated region
    $region22: #{tpu_custom_call.1} parent=1 // pred_check
      _
    $region23: #{tpu_custom_call.1} parent=1 // pred_check_branch
      %34 = sbr.rel (0) target = $region25
    $region24: #{tpu_custom_call.1} parent=1 // pred_region
      %36 = dma.done [#allocation3], 1024
    $region25: #{tpu_custom_call.1} parent=1 // pred_fallthru
      _
    %v37 = vld [vmem:[#allocation2] sm:$0xff]
    %v38 = vld [vmem:[#allocation2 + $0x8] sm:$0xff]
    %v39 = vld [vmem:[#allocation2 + $0x10] sm:$0xff]
    %v40 = vld [vmem:[#allocation2 + $0x18] sm:$0xff]
    %v41 = vld [vmem:[#allocation2 + $0x20] sm:$0xff]
    %v42 = vld [vmem:[#allocation2 + $0x28] sm:$0xff]
    %v43 = vld [vmem:[#allocation2 + $0x30] sm:$0xff]
    %v44 = vld [vmem:[#allocation2 + $0x38] sm:$0xff]
    %v45 = vadd.f32 %v37, %v38
    %46 = vadd.xlane.f32.xlu0 %v45
    %v47 = vpop.xlane.xlu0 %46
    %v48 = vadd.f32 %v39, %v40
    %49 = vadd.xlane.f32.xlu0 %v48
    %v50 = vpop.xlane.xlu0 %49
    %v51 = vadd.f32 %v41, %v42
    %52 = vadd.xlane.f32.xlu0 %v51
    %v53 = vpop.xlane.xlu0 %52
    %v54 = vadd.f32 %v43, %v44
    %55 = vadd.xlane.f32.xlu0 %v54
    %v56 = vpop.xlane.xlu0 %55
    %v57 = vmul.f32 %v47, 0.00390625
    %v58 = vmul.f32 %v50, 0.00390625
    %v59 = vmul.f32 %v53, 0.00390625
    %v60 = vmul.f32 %v56, 0.00390625
    %v61 = vld [vmem:[%s1] sm:$0xff]
    %v62 = vld [vmem:[%s1 + $0x8] sm:$0xff]
    %v63 = vld [vmem:[%s2] sm:$0x1]
    %v65 = vperm.slane %v63, 0
    %v71 = vlaneseq
    %v72 = vand.u32 %v71, 127
    %v73 = vperm.slane %v57, %v72
    %v74 = vadd.s32 %v72, 4294967288
    %v75 = vperm.slane %v58, %v74
    %vm76 = vcmask 130112
    %v77 = vsel %vm76, %v75, %v73
    %v78 = vperm.slane %v59, %v72
    %v79 = vperm.slane %v60, %v74
    %v80 = vsel %vm76, %v79, %v78
    %vm81 = vcmask 1041409
    %v82 = vsel %vm81, %v80, %v77
    %vm83 = vcmask 130048
    %v84 = vsel %vm83, %v82, 0
    %86 = vmatpush.msra.mxu0 0.0
    %87 = vmatpush.msra.mxu0 0.0
    %88 = vmatpush.msra.mxu0 0.0
    %89 = vmatpush.msra.mxu0 0.0
    %90 = vmatpush.msra.mxu0 0.0
    %91 = vmatpush.msra.mxu0 0.0
    %92 = vmatpush.msra.mxu0 0.0
    %93 = vmatpush.msra.mxu0 0.0
    %94 = vmatpush.msra.mxu0 0.0
    %95 = vmatpush.msra.mxu0 0.0
    %96 = vmatpush.msra.mxu0 0.0
    %97 = vmatpush.msra.mxu0 0.0
    %98 = vmatpush.msra.mxu0 0.0
    %99 = vmatpush.msra.mxu0 0.0
    %100 = vmatpush.msra.mxu0 %v62
    %101 = vmatpush.msra.mxu0 %v61
    %102 = vmatmul.f32.gmra.mxu0 %v84
    %v103 = vpop.f32.mrf.mxu0
    %v104 = vadd.f32 %v65, %v103
    %105 = vdwg.mxu0
    %v106 = vmax.f32 %v104, 0.0
    %v107 = vld [vmem:[%s3] sm:$0x3]
    %v108 = vld [vmem:[%s4] sm:$0x1]
    %v110 = vperm.slane %v108, 0
    %vm112 = vcmask 15360
    %v114 = vsel %vm112, %v106, 0
    %vm116 = vcmask 1041408
    %v118 = vsel %vm116, %v107, 0
    %120 = vmatpush.msra.mxu0 0.0
    %121 = vmatpush.msra.mxu0 0.0
    %122 = vmatpush.msra.mxu0 0.0
    %123 = vmatpush.msra.mxu0 0.0
    %124 = vmatpush.msra.mxu0 0.0
    %125 = vmatpush.msra.mxu0 0.0
    %126 = vmatpush.msra.mxu0 0.0
    %127 = vmatpush.msra.mxu0 0.0
    %128 = vmatpush.msra.mxu0 0.0
    %129 = vmatpush.msra.mxu0 0.0
    %130 = vmatpush.msra.mxu0 0.0
    %131 = vmatpush.msra.mxu0 0.0
    %132 = vmatpush.msra.mxu0 0.0
    %133 = vmatpush.msra.mxu0 0.0
    %134 = vmatpush.msra.mxu0 0.0
    %135 = vmatpush.msra.mxu0 %v118
    %136 = vmatmul.f32.gmra.mxu0 %v114
    %v137 = vpop.f32.mrf.mxu0
    %v138 = vadd.f32 %v110, %v137
    %139 = vdwg.mxu0
    %v140 = vxor.u32 %v138, 2147483648
    %v141 = vmul.f32 %v140, 1.442695
    %v142 = vpow.pop %v141
    %v143 = vadd.f32 %v142, 1.0
    %v144 = vrcp.pop %v143
    %v145 = vmul.f32 %v143, %v144
    %v146 = vsub.f32 1.0, %v145
    %v147 = vmul.f32 %v144, %v146
    %v148 = vadd.f32 %v144, %v147
    %vm149 = vweird.f32 %v143
    %vm150 = vweird.f32 %v144
    %vm151 = vmor %vm149, %vm150
    %v152 = vsel %vm151, %v144, %v148
    %v153 = vand.u32 2147483647, %v143
    %vm154 = vcmp.eq.f32.partialorder %v153, 8.507059e+37
    %v155 = vand.u32 %v143, 2147483648
    %v156 = vor.u32 1.1754944e-38, %v155
    %v157 = vsel %vm154, %v156, %v152
    %v158 = vmul.f32 1.0, %v157
    %v159 = vperm.slane %v158, 0
    %v160 = vlaneseq
    %v161 = vshrl.u32 %v160, 7
    %163 = vset.pattern.permute.xlu0 %v161
    %164 = vperm.xlu0 %163, %v159
    %v165 = vpop.permute.xlu0 %164
    %v166 = vlaneseq
    %v167 = vshrl.u32 %v166, 7
    %v168 = vadd.s32 %v167, 8
    %169 = vset.pattern.permute.xlu0 %v168
    %170 = vperm.xlu0 %169, %v159
    %v171 = vpop.permute.xlu0 %170
    %v172 = vperm.slane %v158, 1
    %v173 = vlaneseq
    %v174 = vshrl.u32 %v173, 7
    %176 = vset.pattern.permute.xlu0 %v174
    %177 = vperm.xlu0 %176, %v172
    %v178 = vpop.permute.xlu0 %177
    %v179 = vlaneseq
    %v180 = vshrl.u32 %v179, 7
    %v181 = vadd.s32 %v180, 8
    %182 = vset.pattern.permute.xlu0 %v181
    %183 = vperm.xlu0 %182, %v172
    %v184 = vpop.permute.xlu0 %183
    %v185 = vmul.f32 %v37, %v165
    %v186 = vmul.f32 %v38, %v165
    %v187 = vmul.f32 %v39, %v171
    %v188 = vmul.f32 %v40, %v171
    %v189 = vmul.f32 %v41, %v178
    %v190 = vmul.f32 %v42, %v178
    %v191 = vmul.f32 %v43, %v184
    %v192 = vmul.f32 %v44, %v184
    %193 = vst [vmem:[#allocation5] sm:$0xff] %v185
    %194 = vst [vmem:[#allocation5 + $0x8] sm:$0xff] %v186
    %195 = vst [vmem:[#allocation5 + $0x10] sm:$0xff] %v187
    %196 = vst [vmem:[#allocation5 + $0x18] sm:$0xff] %v188
    %197 = vst [vmem:[#allocation5 + $0x20] sm:$0xff] %v189
    %198 = vst [vmem:[#allocation5 + $0x28] sm:$0xff] %v190
    %199 = vst [vmem:[#allocation5 + $0x30] sm:$0xff] %v191
    %200 = vst [vmem:[#allocation5 + $0x38] sm:$0xff] %v192
    // Predicated region
    $region26: #{tpu_custom_call.1} parent=1 // pred_check
      _
    $region27: #{tpu_custom_call.1} parent=1 // pred_check_branch
      %202 = sbr.rel (0) target = $region29
    $region28: #{tpu_custom_call.1} parent=1 // pred_region
      %204 = vsyncadd [#allocation4], 0
      %s205 = sshll.u32 [#allocation5], 4
      %s206 = int_to_ptr.vmem [resolvable:$true] %s205
      %s207 = sshll.u32 %s5, 4
      %s208 = int_to_ptr.hbm [resolvable:$true] %s207
      %213 = dma.vmem_to_hbm [thread:$0]  %s206, 1024, %s208, [#allocation4], 256, 256, 16
    $region29: #{tpu_custom_call.1} parent=1 // pred_fallthru
      _
    // Predicated region
    $region30: #{tpu_custom_call.1} parent=1 // pred_check
      _
    $region31: #{tpu_custom_call.1} parent=1 // pred_check_branch
      %215 = sbr.rel (0) target = $region33
    $region32: #{tpu_custom_call.1} parent=1 // pred_region
      %217 = dma.done [#allocation4], 1024
    $region33: #{tpu_custom_call.1} parent=1 // pred_fallthru
      _
    %218 = vsyncpa [#allocation3], 1
    %219 = vsyncpa [#allocation4], 1

</llo_original>
